<compile_context>
chip_gen: v7x
topology: tpu7x:2x2x1
jax: 0.10.0
libtpu: 0.0.40
codegen_flags: <defaults>
</compile_context>

<pallas_src>
import math
import jax
import jax.numpy as jnp
from jax import lax
from jax.experimental import pallas as pl
from jax.experimental.pallas import tpu as pltpu

# ------------------ config (small synthetic; module defaults noted) ------------------
SAMPLING_RATE  = 16000
BLOCK_SIZE     = 64          # module default 320
N_MAG_HARMONIC = 33          # module default 176
N_MAG_NOISE    = 17          # module default 80
N_HARMONICS    = 32          # module default 150
N_WAVLM        = 256         # module default 1024
CHANNEL_NUM    = 64          # channel_num_filter
CONVOLVE_POWER = 2
MIN_F0         = 80.0
MAX_F0         = 1000.0
RATIO          = 0.4         # self.ratio buffer

N_BINS       = BLOCK_SIZE // 2 + 1              # 33
LOG_EXP      = math.log(10.0)                   # exponent in scale_function
LOG_F0_RANGE = math.log(MAX_F0 / MIN_F0)

# MXU-friendly padded widths
D_IN     = 2 * N_WAVLM + 1                      # 513
D_IN_PAD = ((D_IN + 127) // 128) * 128          # 640
HID_PAD  = ((max(CHANNEL_NUM, 128) + 127) // 128) * 128   # 128
N_HEADS  = 1 + N_MAG_HARMONIC + N_MAG_NOISE     # 51
OUT_PAD  = 128                                  # fused lane-dense controls slab
SPEC_W   = 2 * N_BINS                           # 66  (re|im per branch)
MULT_W   = 2 * SPEC_W                           # 132 (harmonic + noise spectra)
FRAME_W  = 2 * BLOCK_SIZE                       # 128 (harmonic frame | noise frame)
OSC_LW   = 128                                  # oscillator lane width (samples)

VMEM_LIMIT = 48 * 1024 * 1024


# ------------------------------ small helpers ---------------------------------
def _pick_tile(n, max_tile, align):
    """Row tile: multiple of `align`, <= max_tile, aiming for a grid of >= 2 steps."""
    if n <= align:
        return align
    half = (((n + 1) // 2) + align - 1) // align * align
    return max(align, min(max_tile, half))


def _pad_rows(a, rows):
    pad = rows - a.shape[0]
    if pad == 0:
        return a
    return jnp.pad(a, ((0, pad),) + ((0, 0),) * (a.ndim - 1))


# --------------------------- kernel 1: ControlGen ------------------------------
# TODO(synk): ControlGen source unavailable; implemented as a per-frame 2-layer MLP
# (1x1-conv equivalent) over concat(x6, x12, f0_norm), with the f0/harmonic/noise
# heads + sigmoid, unit_to_F0 (log scale) and scale_function fused in-kernel.
def _controls_kernel(x_ref, w1_ref, b1_ref, w2_ref, b2_ref, out_ref):
    # x: [TM, D_IN_PAD] bf16, w1: [D_IN_PAD, HID_PAD] bf16, w2: [HID_PAD, OUT_PAD] bf16
    h = jnp.dot(x_ref[...], w1_ref[...], preferred_element_type=jnp.float32)
    h = jnp.maximum(h + b1_ref[...], 0.0)
    c = jnp.dot(h.astype(jnp.bfloat16), w2_ref[...],
                preferred_element_type=jnp.float32) + b2_ref[...]

    # stable: log(sigmoid(c)) = -softplus(-c)
    softplus_neg = jnp.maximum(-c, 0.0) + jnp.log(1.0 + jnp.exp(-jnp.abs(c)))
    sig = jnp.exp(-softplus_neg)                          # sigmoid(c)

    # f0 head: unit_to_F0 (log scale), then zero below min_f0 (reference semantics;
    # with use_log=True f0 >= min_f0 always, so the where matches the dead branch
    # of the original module).
    f0 = MIN_F0 * jnp.exp(sig * LOG_F0_RANGE)
    f0 = jnp.where(f0 < MIN_F0, 0.0, f0)

    # scale_function(x) = 2*sigmoid(x)**log(10) + 1e-7 = 2*exp(-log(10)*softplus(-x)) + 1e-7
    scale = 2.0 * jnp.exp(-LOG_EXP * softplus_neg) + 1e-7

    col = lax.broadcasted_iota(jnp.int32, c.shape, 1)
    out_ref[...] = jnp.where(col == 0, f0,
                             jnp.where(col < N_HEADS, scale, 0.0))


# ----------------------- kernel 2: SawtoothOscillator --------------------------
# TODO(synk): SawtoothOscillator implemented as an anti-aliased additive sine bank
# with fixed 1/k amplitudes scaled by `ratio` (phase cumsum done in JAX glue).
# sin(k*theta) via Chebyshev recurrence -> one sin/cos per sample, VPU FMAs per harmonic.
def _oscillator_kernel(amp_ref, phase_ref, pitch_ref, out_ref):
    phase = phase_ref[...]                       # [TR, 128] f32, lane-dense
    pitch = pitch_ref[...]
    c1 = jnp.cos(phase)
    s1 = jnp.sin(phase)
    two_c1 = 2.0 * c1
    nyq = SAMPLING_RATE / 2.0

    kp = pitch                                   # k * pitch for k = 1
    acc = jnp.where(kp < nyq, amp_ref[0] * s1, 0.0)
    s_km2 = jnp.zeros_like(s1)                   # sin(0 * phase)
    s_km1 = s1
    for k in range(2, N_HARMONICS + 1):
        s_k = two_c1 * s_km1 - s_km2             # sin(k*phase)
        kp = kp + pitch
        acc = acc + jnp.where(kp < nyq, amp_ref[k - 1] * s_k, 0.0)
        s_km2, s_km1 = s_km1, s_k
    out_ref[...] = RATIO * acc


# ------------------------ kernel 3: frequency_filter ---------------------------
# TODO(synk): frequency_filter implemented as per-frame zero-phase DFT-domain
# filtering (DFT-as-matmul on the MXU); the reference FIR path's Blackman-Harris
# IR windowing and overlap-add are omitted (no FFT primitive in Pallas).
def _filter_kernel(x_ref, mult_ref, fwd_ref, inv_ref, out_ref):
    # x: [TF, 128] bf16 = [harm frame | noise frame]
    spec = jnp.dot(x_ref[...], fwd_ref[...], preferred_element_type=jnp.float32)
    spec = spec * mult_ref[...]                  # [TF, 132] = [reH|imH|reN|imN] * mags
    out_ref[...] = jnp.dot(spec.astype(jnp.bfloat16), inv_ref[...],
                           preferred_element_type=jnp.float32)


# --------------------------------- params -------------------------------------
def init_params(key):
    k1, k2 = jax.random.split(key)
    w1 = jnp.zeros((D_IN_PAD, HID_PAD), jnp.float32)
    w1 = w1.at[:D_IN, :CHANNEL_NUM].set(
        0.02 * jax.random.normal(k1, (D_IN, CHANNEL_NUM), jnp.float32))
    w2 = jnp.zeros((HID_PAD, OUT_PAD), jnp.float32)
    w2 = w2.at[:CHANNEL_NUM, :N_HEADS].set(
        0.02 * jax.random.normal(k2, (CHANNEL_NUM, N_HEADS), jnp.float32))
    return dict(
        w1=w1,
        b1=jnp.zeros((1, HID_PAD), jnp.float32),
        w2=w2,
        b2=jnp.zeros((1, OUT_PAD), jnp.float32),
        # nn.Parameter(1 / arange(1, n_harmonics+1)), requires_grad=False
        harmonic_amplitudes=1.0 / jnp.arange(1, N_HARMONICS + 1, dtype=jnp.float32),
    )


# --------------------------------- glue ----------------------------------------
def _upsample(f0, block_size):
    """[B, T, 1] -> [B, T*block_size, 1] linear interpolation, flat last frame."""
    B, T, _ = f0.shape
    f = jnp.concatenate([f0, f0[:, -1:, :]], axis=1)[..., 0]          # [B, T+1]
    s = jnp.arange(T * block_size)
    i0 = s // block_size
    frac = (s % block_size).astype(jnp.float32) / block_size
    return (f[:, i0] * (1.0 - frac) + f[:, i0 + 1] * frac)[..., None]


def _interp_bins(mag, n_out):
    n_in = mag.shape[-1]
    pos = jnp.linspace(0.0, n_in - 1.0, n_out)
    i0 = jnp.clip(jnp.floor(pos).astype(jnp.int32), 0, n_in - 1)
    i1 = jnp.minimum(i0 + 1, n_in - 1)
    frac = pos - i0.astype(jnp.float32)
    return jnp.take(mag, i0, axis=-1) * (1.0 - frac) + jnp.take(mag, i1, axis=-1) * frac


def _dft_filter_mats():
    """Fused block-diagonal forward/inverse real-DFT matrices (bf16, w/L folded in)."""
    t = jnp.arange(BLOCK_SIZE, dtype=jnp.float32)[:, None]
    k = jnp.arange(N_BINS, dtype=jnp.float32)[None, :]
    ang = 2.0 * math.pi * t * k / BLOCK_SIZE
    C, S = jnp.cos(ang), jnp.sin(ang)                                  # [L, nb]
    fwd = jnp.concatenate([C, -S], axis=1)                             # x@fwd -> [re|im]
    kk = jnp.arange(N_BINS)
    w = jnp.where((kk == 0) | (kk == BLOCK_SIZE // 2), 1.0, 2.0).astype(jnp.float32)
    wk = (w / BLOCK_SIZE)[:, None]
    inv = jnp.concatenate([C.T * wk, -(S.T) * wk], axis=0)             # [2nb, L]

    zf = jnp.zeros_like(fwd)
    fwd_big = jnp.concatenate(
        [jnp.concatenate([fwd, zf], axis=1),
         jnp.concatenate([zf, fwd], axis=1)], axis=0)                  # [2L, 4nb] = [128,132]
    zi = jnp.zeros_like(inv)
    inv_big = jnp.concatenate(
        [jnp.concatenate([inv, zi], axis=1),
         jnp.concatenate([zi, inv], axis=1)], axis=0)                  # [4nb, 2L] = [132,128]
    return fwd_big.astype(jnp.bfloat16), inv_big.astype(jnp.bfloat16)


def subtractive_synthesiser_forward(params, x6, x12, f0_norm,
                                    x6_emo1=None, x6_emo2=None,
                                    initial_phase=None, noise_key=None):
    B, T, _ = x6.shape
    M = B * T
    N = T * BLOCK_SIZE

    # ---------------- kernel 1: ControlGen + heads (tiled over M) ----------------
    x = jnp.concatenate([x6, x12, f0_norm], axis=-1).reshape(M, D_IN)
    x = jnp.pad(x, ((0, 0), (0, D_IN_PAD - D_IN))).astype(jnp.bfloat16)
    tm = _pick_tile(M, 256, 8)
    m_pad = pl.cdiv(M, tm) * tm
    x = _pad_rows(x, m_pad)

    ctrl = pl.pallas_call(
        _controls_kernel,
        grid=(m_pad // tm,),
        in_specs=[
            pl.BlockSpec((tm, D_IN_PAD), lambda i: (i, 0)),
            pl.BlockSpec((D_IN_PAD, HID_PAD), lambda i: (0, 0)),   # resident weights
            pl.BlockSpec((1, HID_PAD), lambda i: (0, 0)),
            pl.BlockSpec((HID_PAD, OUT_PAD), lambda i: (0, 0)),
            pl.BlockSpec((1, OUT_PAD), lambda i: (0, 0)),
        ],
        out_specs=pl.BlockSpec((tm, OUT_PAD), lambda i: (i, 0)),
        out_shape=jax.ShapeDtypeStruct((m_pad, OUT_PAD), jnp.float32),
        compiler_params=pltpu.CompilerParams(
            dimension_semantics=("parallel",), vmem_limit_bytes=VMEM_LIMIT),
        cost_estimate=pl.CostEstimate(
            flops=2 * m_pad * (D_IN_PAD * HID_PAD + HID_PAD * OUT_PAD),
            transcendentals=4 * m_pad * OUT_PAD,
            bytes_accessed=m_pad * (2 * D_IN_PAD + 4 * OUT_PAD)),
    )(x,
      params["w1"].astype(jnp.bfloat16), params["b1"],
      params["w2"].astype(jnp.bfloat16), params["b2"])

    f0 = ctrl[:M, 0:1].reshape(B, T, 1)
    src_param = ctrl[:M, 1:1 + N_MAG_HARMONIC]                          # [M, 33]
    noise_param = ctrl[:M, 1 + N_MAG_HARMONIC:N_HEADS]                  # [M, 17]

    # ------------- upsample to sample rate + phase accumulation (glue) -----------
    pitch = _upsample(f0, BLOCK_SIZE)                                   # [B, N, 1]
    phase = 2.0 * math.pi * jnp.cumsum(pitch[..., 0] / SAMPLING_RATE, axis=1)
    if initial_phase is not None:
        phase = phase + initial_phase[..., 0]
    final_phase = jnp.mod(phase[:, -1:], 2.0 * math.pi)[..., None]      # [B, 1, 1]

    # ---------------- kernel 2: harmonic source (tiled over samples) -------------
    n_pad = pl.cdiv(N, OSC_LW) * OSC_LW
    phase_p = jnp.pad(phase, ((0, 0), (0, n_pad - N))).reshape(-1, OSC_LW)
    pitch_p = jnp.pad(pitch[..., 0], ((0, 0), (0, n_pad - N))).reshape(-1, OSC_LW)
    R = phase_p.shape[0]
    tr = _pick_tile(R, 512, 8)
    r_pad = pl.cdiv(R, tr) * tr
    phase_p = _pad_rows(phase_p, r_pad)
    pitch_p = _pad_rows(pitch_p, r_pad)

    osc = pl.pallas_call(
        _oscillator_kernel,
        grid=(r_pad // tr,),
        in_specs=[
            pl.BlockSpec(memory_space=pltpu.MemorySpace.SMEM),          # amplitudes
            pl.BlockSpec((tr, OSC_LW), lambda i: (i, 0)),
            pl.BlockSpec((tr, OSC_LW), lambda i: (i, 0)),
        ],
        out_specs=pl.BlockSpec((tr, OSC_LW), lambda i: (i, 0)),
        out_shape=jax.ShapeDtypeStruct((r_pad, OSC_LW), jnp.float32),
        compiler_params=pltpu.CompilerParams(
            dimension_semantics=("parallel",), vmem_limit_bytes=VMEM_LIMIT),
    )(params["harmonic_amplitudes"], phase_p, pitch_p)

    harmonic_raw = osc[:R].reshape(B, n_pad)[:, :N]

    # ---------------- noise source: torch.rand_like(...)*2 - 1 (glue) ------------
    if noise_key is None:
        noise_key = jax.random.PRNGKey(1)
    noise_raw = jax.random.uniform(noise_key, (B, N), jnp.float32) * 2.0 - 1.0

    # ------------- kernel 3: frequency_filter, harmonic & noise fused ------------
    hx = harmonic_raw.reshape(M, BLOCK_SIZE)
    nx = noise_raw.reshape(M, BLOCK_SIZE)
    x2 = jnp.concatenate([hx, nx], axis=-1).astype(jnp.bfloat16)        # [M, 128]

    Hh = src_param if N_MAG_HARMONIC == N_BINS else _interp_bins(src_param, N_BINS)
    Hn = noise_param if N_MAG_NOISE == N_BINS else _interp_bins(noise_param, N_BINS)
    Hh = Hh ** CONVOLVE_POWER                                           # self-convolution
    Hn = Hn ** CONVOLVE_POWER
    mult = jnp.concatenate([Hh, Hh, Hn, Hn], axis=-1)                   # [M, 132]

    fwd_big, inv_big = _dft_filter_mats()

    tf = _pick_tile(M, 512, 8)
    mf_pad = pl.cdiv(M, tf) * tf
    x2 = _pad_rows(x2, mf_pad)
    mult = _pad_rows(mult, mf_pad)

    filt = pl.pallas_call(
        _filter_kernel,
        grid=(mf_pad // tf,),
        in_specs=[
            pl.BlockSpec((tf, FRAME_W), lambda i: (i, 0)),
            pl.BlockSpec((tf, MULT_W), lambda i: (i, 0)),
            pl.BlockSpec((FRAME_W, MULT_W), lambda i: (0, 0)),          # resident DFT mats
            pl.BlockSpec((MULT_W, FRAME_W), lambda i: (0, 0)),
        ],
        out_specs=pl.BlockSpec((tf, FRAME_W), lambda i: (i, 0)),
        out_shape=jax.ShapeDtypeStruct((mf_pad, FRAME_W), jnp.float32),
        compiler_params=pltpu.CompilerParams(
            dimension_semantics=("parallel",), vmem_limit_bytes=VMEM_LIMIT),
        cost_estimate=pl.CostEstimate(
            flops=4 * mf_pad * FRAME_W * MULT_W,
            transcendentals=0,
            bytes_accessed=mf_pad * (2 * FRAME_W + 4 * MULT_W + 4 * FRAME_W)),
    )(x2, mult, fwd_big, inv_big)

    harmonic = filt[:M, :BLOCK_SIZE].reshape(B, N)
    noise = filt[:M, BLOCK_SIZE:].reshape(B, N)
    signal = harmonic + noise

    # TODO(synk): ControlGen emotion branches unused when x6_emo1/x6_emo2 are None.
    x_phon_emo1, x_phon_emo2 = None, None
    return signal, f0, final_phase, (harmonic, noise), (x_phon_emo1, x_phon_emo2)


# --------------------------------- main ----------------------------------------
if __name__ == "__main__":
    B, T = 2, 8
    key = jax.random.PRNGKey(0)
    k1, k2, k3, k4 = jax.random.split(key, 4)
    x6 = jax.random.normal(k1, (B, T, N_WAVLM), jnp.float32)
    x12 = jax.random.normal(k2, (B, T, N_WAVLM), jnp.float32)
    f0_norm = jax.random.uniform(k3, (B, T, 1), jnp.float32)

    params = init_params(jax.random.PRNGKey(42))

    outs = subtractive_synthesiser_forward(params, x6, x12, f0_norm, noise_key=k4)
    jax.block_until_ready(jax.tree_util.tree_leaves(outs))
    print("KERNEL_OK")
</pallas_src>

<mosaic_0001>
module attributes {stable_mosaic.version = 11 : i64} {
  func.func @_controls_kernel(%arg0: i32, %arg1: memref<8x640xbf16, #tpu.memory_space<vmem>>, %arg2: memref<640x128xbf16, #tpu.memory_space<vmem>>, %arg3: memref<1x128xf32, #tpu.memory_space<vmem>>, %arg4: memref<128x128xbf16, #tpu.memory_space<vmem>>, %arg5: memref<1x128xf32, #tpu.memory_space<vmem>>, %arg6: memref<8x128xf32, #tpu.memory_space<vmem>>) attributes {dimension_semantics = [#tpu.dimension_semantics<parallel>], iteration_bounds = array<i64: 2>, scalar_prefetch = 0 : i64, scratch_operands = 0 : i64, tpu.core_type = #tpu.core_type<tc>, window_params = [{transform_indices = @transform_0, window_bounds = array<i64: 8, 640>}, {pipeline_mode = #tpu.pipeline_mode<synchronous>, transform_indices = @transform_1, window_bounds = array<i64: 640, 128>}, {pipeline_mode = #tpu.pipeline_mode<synchronous>, transform_indices = @transform_2, window_bounds = array<i64: 1, 128>}, {pipeline_mode = #tpu.pipeline_mode<synchronous>, transform_indices = @transform_3, window_bounds = array<i64: 128, 128>}, {pipeline_mode = #tpu.pipeline_mode<synchronous>, transform_indices = @transform_4, window_bounds = array<i64: 1, 128>}, {transform_indices = @transform_5, window_bounds = array<i64: 8, 128>}]} {
    %c0 = arith.constant 0 : index
    %c0_0 = arith.constant 0 : index
    %0 = vector.load %arg1[%c0, %c0_0] : memref<8x640xbf16, #tpu.memory_space<vmem>>, vector<8x640xbf16>
    %c0_1 = arith.constant 0 : index
    %c0_2 = arith.constant 0 : index
    %1 = vector.load %arg2[%c0_1, %c0_2] : memref<640x128xbf16, #tpu.memory_space<vmem>>, vector<640x128xbf16>
    %cst = arith.constant dense<0.000000e+00> : vector<8x128xf32>
    %2 = tpu.matmul %0, %1, %cst {dimension_numbers = #tpu.dot_dimension_numbers<[1], [0], [0], [1], [0, 0, 1, 1], [], []>} : vector<8x640xbf16>, vector<640x128xbf16>, vector<8x128xf32> -> vector<8x128xf32>
    %c0_3 = arith.constant 0 : index
    %c0_4 = arith.constant 0 : index
    %3 = vector.load %arg3[%c0_3, %c0_4] : memref<1x128xf32, #tpu.memory_space<vmem>>, vector<1x128xf32>
    %4 = vector.broadcast %3 : vector<1x128xf32> to vector<8x128xf32>
    %5 = arith.addf %2, %4 : vector<8x128xf32>
    %cst_5 = arith.constant 0.000000e+00 : f32
    %6 = vector.broadcast %cst_5 : f32 to vector<8x128xf32>
    %7 = arith.maximumf %5, %6 : vector<8x128xf32>
    %8 = arith.truncf %7 : vector<8x128xf32> to vector<8x128xbf16>
    %c0_6 = arith.constant 0 : index
    %c0_7 = arith.constant 0 : index
    %9 = vector.load %arg4[%c0_6, %c0_7] : memref<128x128xbf16, #tpu.memory_space<vmem>>, vector<128x128xbf16>
    %cst_8 = arith.constant dense<0.000000e+00> : vector<8x128xf32>
    %10 = tpu.matmul %8, %9, %cst_8 {dimension_numbers = #tpu.dot_dimension_numbers<[1], [0], [0], [1], [0, 0, 1, 1], [], []>} : vector<8x128xbf16>, vector<128x128xbf16>, vector<8x128xf32> -> vector<8x128xf32>
    %c0_9 = arith.constant 0 : index
    %c0_10 = arith.constant 0 : index
    %11 = vector.load %arg5[%c0_9, %c0_10] : memref<1x128xf32, #tpu.memory_space<vmem>>, vector<1x128xf32>
    %12 = vector.broadcast %11 : vector<1x128xf32> to vector<8x128xf32>
    %13 = arith.addf %10, %12 : vector<8x128xf32>
    %cst_11 = arith.constant 0.000000e+00 : f32
    %14 = vector.broadcast %cst_11 : f32 to vector<8x128xf32>
    %15 = arith.subf %14, %13 : vector<8x128xf32>
    %cst_12 = arith.constant 0.000000e+00 : f32
    %16 = vector.broadcast %cst_12 : f32 to vector<8x128xf32>
    %17 = arith.maximumf %15, %16 : vector<8x128xf32>
    %18 = math.absf %13 : vector<8x128xf32>
    %cst_13 = arith.constant 0.000000e+00 : f32
    %19 = vector.broadcast %cst_13 : f32 to vector<8x128xf32>
    %20 = arith.subf %19, %18 : vector<8x128xf32>
    %21 = math.exp %20 : vector<8x128xf32>
    %cst_14 = arith.constant 1.000000e+00 : f32
    %22 = vector.broadcast %cst_14 : f32 to vector<8x128xf32>
    %23 = arith.addf %22, %21 : vector<8x128xf32>
    %24 = math.log %23 : vector<8x128xf32>
    %25 = arith.addf %17, %24 : vector<8x128xf32>
    %cst_15 = arith.constant 0.000000e+00 : f32
    %26 = vector.broadcast %cst_15 : f32 to vector<8x128xf32>
    %27 = arith.subf %26, %25 : vector<8x128xf32>
    %28 = math.exp %27 : vector<8x128xf32>
    %cst_16 = arith.constant 2.5257287 : f32
    %29 = vector.broadcast %cst_16 : f32 to vector<8x128xf32>
    %30 = arith.mulf %28, %29 : vector<8x128xf32>
    %31 = math.exp %30 : vector<8x128xf32>
    %cst_17 = arith.constant 8.000000e+01 : f32
    %32 = vector.broadcast %cst_17 : f32 to vector<8x128xf32>
    %33 = arith.mulf %32, %31 : vector<8x128xf32>
    %cst_18 = arith.constant 8.000000e+01 : f32
    %34 = vector.broadcast %cst_18 : f32 to vector<8x128xf32>
    %35 = arith.cmpf olt, %33, %34 : vector<8x128xf32>
    %cst_19 = arith.constant 0.000000e+00 : f32
    %36 = vector.broadcast %cst_19 : f32 to vector<8x128xf32>
    %37 = arith.select %35, %36, %33 : vector<8x128xi1>, vector<8x128xf32>
    %cst_20 = arith.constant -2.30258512 : f32
    %38 = vector.broadcast %cst_20 : f32 to vector<8x128xf32>
    %39 = arith.mulf %38, %25 : vector<8x128xf32>
    %40 = math.exp %39 : vector<8x128xf32>
    %cst_21 = arith.constant 2.000000e+00 : f32
    %41 = vector.broadcast %cst_21 : f32 to vector<8x128xf32>
    %42 = arith.mulf %41, %40 : vector<8x128xf32>
    %cst_22 = arith.constant 1.000000e-07 : f32
    %43 = vector.broadcast %cst_22 : f32 to vector<8x128xf32>
    %44 = arith.addf %42, %43 : vector<8x128xf32>
    %45 = tpu.iota {dimensions = array<i32: 1>} : vector<8x128xi32>
    %c0_i32 = arith.constant 0 : i32
    %46 = vector.broadcast %c0_i32 : i32 to vector<8x128xi32>
    %47 = arith.cmpi eq, %45, %46 : vector<8x128xi32>
    %c51_i32 = arith.constant 51 : i32
    %48 = vector.broadcast %c51_i32 : i32 to vector<8x128xi32>
    %49 = arith.cmpi slt, %45, %48 : vector<8x128xi32>
    %cst_23 = arith.constant 0.000000e+00 : f32
    %50 = vector.broadcast %cst_23 : f32 to vector<8x128xf32>
    %51 = arith.select %49, %44, %50 : vector<8x128xi1>, vector<8x128xf32>
    %52 = arith.select %47, %37, %51 : vector<8x128xi1>, vector<8x128xf32>
    %c0_24 = arith.constant 0 : index
    %c0_25 = arith.constant 0 : index
    %53 = vector.load %arg6[%c0_24, %c0_25] : memref<8x128xf32, #tpu.memory_space<vmem>>, vector<8x128xf32>
    tpu.vector_store %arg6[%c0_24, %c0_25], %52 {strides = array<i32>} : memref<8x128xf32, #tpu.memory_space<vmem>>, vector<8x128xf32>,
    return
  }
  func.func @transform_0(%arg0: i32) -> (i32, i32) {
    %c0_i32 = arith.constant 0 : i32
    %c0_i32_0 = arith.constant 0 : i32
    return %arg0, %c0_i32 : i32, i32
  }
  func.func @transform_1(%arg0: i32) -> (i32, i32) {
    %c0_i32 = arith.constant 0 : i32
    %c0_i32_0 = arith.constant 0 : i32
    %c0_i32_1 = arith.constant 0 : i32
    return %c0_i32, %c0_i32_0 : i32, i32
  }
  func.func @transform_2(%arg0: i32) -> (i32, i32) {
    %c0_i32 = arith.constant 0 : i32
    %c0_i32_0 = arith.constant 0 : i32
    %c0_i32_1 = arith.constant 0 : i32
    return %c0_i32, %c0_i32_0 : i32, i32
  }
  func.func @transform_3(%arg0: i32) -> (i32, i32) {
    %c0_i32 = arith.constant 0 : i32
    %c0_i32_0 = arith.constant 0 : i32
    %c0_i32_1 = arith.constant 0 : i32
    return %c0_i32, %c0_i32_0 : i32, i32
  }
  func.func @transform_4(%arg0: i32) -> (i32, i32) {
    %c0_i32 = arith.constant 0 : i32
    %c0_i32_0 = arith.constant 0 : i32
    %c0_i32_1 = arith.constant 0 : i32
    return %c0_i32, %c0_i32_0 : i32, i32
  }
  func.func @transform_5(%arg0: i32) -> (i32, i32) {
    %c0_i32 = arith.constant 0 : i32
    %c0_i32_0 = arith.constant 0 : i32
    return %arg0, %c0_i32 : i32, i32
  }
}

</mosaic_0001>

<llo_original>
// kernel: tpu_custom_call.1
$region0: #{tpu_custom_call.1}
  #allocation0 [shape = 'u32[]', space=smem, size = 0x4, offset = 0x4, fixed_abs, tag = 'smem constant byte address 0x4 - core index']
  #allocation1 [shape = 'u32[144,128]{1,0:T(1,128)}', space=vmem, size = 0x12000, scoped, tag = 'internal scratch']
  %s0 = inlined_call_operand.hbm [shape: bf16[16,640], index: 0, kind: input, shape index: {}]
  %s1 = inlined_call_operand.hbm [shape: bf16[640,128], index: 1, kind: input, shape index: {}]
  %s2 = inlined_call_operand.vmem [shape: f32[1,128], index: 2, kind: input, shape index: {}]
  %s3 = inlined_call_operand.hbm [shape: bf16[128,128], index: 3, kind: input, shape index: {}]
  %s4 = inlined_call_operand.vmem [shape: f32[1,128], index: 4, kind: input, shape index: {}]
  %s5 = inlined_call_operand.hbm [shape: f32[16,128], index: 5, kind: output, shape index: {}]
  %s6 = sld [smem:[#allocation0]]
  $region65: #{tpu_custom_call.1} parent=0
    _
  %s8 = ssub.s32 1, %s6
  %s9 = scalar_select 0, %s8, %s6
  $region1: #{tpu_custom_call.1} parent=0
    #allocation2 [shape = 'u8[20480]{0}', space=vmem, size = 0x5000, scoped, tag = 'input window, operand 0']
    #allocation3 [shape = 's32[2]{0}', space=sflag, size = 0x8, scoped, tag = 'scoped memory for tpu_custom_call.1']
    #allocation4 [shape = 's32[2]{0}', space=sflag, size = 0x8, scoped, tag = 'scoped memory for tpu_custom_call.1']
    #allocation5 [shape = 'u8[163840]{0}', space=vmem, size = 0x28000, scoped, tag = 'input window, operand 1, single buffered']
    #allocation6 [shape = 's32[1]{0}', space=sflag, size = 0x4, scoped, tag = 'scoped memory for tpu_custom_call.1']
    #allocation7 [shape = 'u8[32768]{0}', space=vmem, size = 0x8000, scoped, tag = 'input window, operand 3, single buffered']
    #allocation8 [shape = 'u8[8192]{0}', space=vmem, size = 0x2000, scoped, tag = 'output window, operand 0']
    %10 = vsyncpa [#allocation3], 0
    %s11 = scalar_lea.sflag [#allocation3], 1
    %12 = vsyncpa %s11, 0
    %13 = vsyncpa [#allocation6], 0
    %14 = vsyncpa [#allocation4], 0
    %s15 = scalar_lea.sflag [#allocation4], 1
    %16 = vsyncpa %s15, 0
    loop: start=0, step=1, limit=4
    $region2: #{tpu_custom_call.1} parent=1 // loop_pre_header
      _
    $region3: #{tpu_custom_call.1} parent=1 // loop_header
      %s18 = sphi 0, %s22
      %p19 = scmp.ge.s32.totalorder %s18, 4
      %s28 = sphi 0, %s30
      %s31 = sphi 0, %s28
      %s32 = sphi 0, %s31
      %s48 = sphi 0, %s32
      %s52 = sphi 0, %s52
      %s54 = sphi 0, %s52
      %s55 = sphi 0, %s54
      %s69 = sphi 0, %s55
      %s73 = sphi 0, %s73
      %s75 = sphi 0, %s73
      %s76 = sphi 0, %s75
      %s90 = sphi 0, %s76
      %s94 = sphi 0, %s94
      %s96 = sphi 0, %s94
      %s97 = sphi 0, %s96
      %s111 = sphi 0, %s97
      %s115 = sphi 0, %s115
      %s117 = sphi 0, %s115
      %s118 = sphi 0, %s117
      %s132 = sphi 0, %s118
      %s138 = sphi 0, %s140
      %s141 = sphi 0, %s138
      %s142 = sphi 0, %s141
      %s158 = sphi 0, %s142
    $region4: #{tpu_custom_call.1} parent=1 // loop_header_branch
      %21 = sbr.rel (%p19) target = $region8
    $region5: #{tpu_custom_call.1} parent=1 // loop_body
      %s23 = ssub.s32 %s18, 1
      %s24 = ssub.s32 %s18, 2
      %s25 = sadd.s32 %s18, 1
      %s26 = ssub.s32 %s18, %s25
      %p27 = scmp.eq.s32.totalorder %s26, 0
      %s29 = sadd.s32 %s28, 1
      %s30 = scalar_select %p27, %s28, %s29
      %p33 = pneg %p27
      %p34 = scmp.eq.s32.totalorder %s18, 1
      %p35 = por %p33, %p34
      %p36 = scmp.ne.s32.totalorder %s28, %s31
      %p37 = scmp.eq.s32.totalorder %s18, 0
      %p38 = por %p36, %p37
      %p39 = scmp.ne.s32.totalorder %s28, %s31
      %p40 = scmp.eq.s32.totalorder %s23, 1
      %p41 = por %p39, %p40
      %p42 = scmp.ne.s32.totalorder %s31, %s32
      %p43 = scmp.eq.s32.totalorder %s23, 0
      %p44 = por %p42, %p43
      %p45 = scmp.ne.s32.totalorder %s31, %s32
      %p46 = scmp.eq.s32.totalorder %s24, 1
      %p47 = por %p45, %p46
      %p49 = scmp.ne.s32.totalorder %s32, %s48
      %p50 = scmp.eq.s32.totalorder %s24, 0
      %p51 = por %p49, %p50
      %s53 = sadd.s32 %s52, 1
      %p56 = scmp.eq.s32.totalorder %s18, 1
      %p57 = scmp.ne.s32.totalorder %s52, %s54
      %p58 = scmp.eq.s32.totalorder %s18, 0
      %p59 = por %p57, %p58
      %p60 = scmp.ne.s32.totalorder %s52, %s54
      %p61 = scmp.eq.s32.totalorder %s23, 1
      %p62 = por %p60, %p61
      %p63 = scmp.ne.s32.totalorder %s54, %s55
      %p64 = scmp.eq.s32.totalorder %s23, 0
      %p65 = por %p63, %p64
      %p66 = scmp.ne.s32.totalorder %s54, %s55
      %p67 = scmp.eq.s32.totalorder %s24, 1
      %p68 = por %p66, %p67
      %p70 = scmp.ne.s32.totalorder %s55, %s69
      %p71 = scmp.eq.s32.totalorder %s24, 0
      %p72 = por %p70, %p71
      %s74 = sadd.s32 %s73, 1
      %p77 = scmp.eq.s32.totalorder %s18, 1
      %p78 = scmp.ne.s32.totalorder %s73, %s75
      %p79 = scmp.eq.s32.totalorder %s18, 0
      %p80 = por %p78, %p79
      %p81 = scmp.ne.s32.totalorder %s73, %s75
      %p82 = scmp.eq.s32.totalorder %s23, 1
      %p83 = por %p81, %p82
      %p84 = scmp.ne.s32.totalorder %s75, %s76
      %p85 = scmp.eq.s32.totalorder %s23, 0
      %p86 = por %p84, %p85
      %p87 = scmp.ne.s32.totalorder %s75, %s76
      %p88 = scmp.eq.s32.totalorder %s24, 1
      %p89 = por %p87, %p88
      %p91 = scmp.ne.s32.totalorder %s76, %s90
      %p92 = scmp.eq.s32.totalorder %s24, 0
      %p93 = por %p91, %p92
      %s95 = sadd.s32 %s94, 1
      %p98 = scmp.eq.s32.totalorder %s18, 1
      %p99 = scmp.ne.s32.totalorder %s94, %s96
      %p100 = scmp.eq.s32.totalorder %s18, 0
      %p101 = por %p99, %p100
      %p102 = scmp.ne.s32.totalorder %s94, %s96
      %p103 = scmp.eq.s32.totalorder %s23, 1
      %p104 = por %p102, %p103
      %p105 = scmp.ne.s32.totalorder %s96, %s97
      %p106 = scmp.eq.s32.totalorder %s23, 0
      %p107 = por %p105, %p106
      %p108 = scmp.ne.s32.totalorder %s96, %s97
      %p109 = scmp.eq.s32.totalorder %s24, 1
      %p110 = por %p108, %p109
      %p112 = scmp.ne.s32.totalorder %s97, %s111
      %p113 = scmp.eq.s32.totalorder %s24, 0
      %p114 = por %p112, %p113
      %s116 = sadd.s32 %s115, 1
      %p119 = scmp.eq.s32.totalorder %s18, 1
      %p120 = scmp.ne.s32.totalorder %s115, %s117
      %p121 = scmp.eq.s32.totalorder %s18, 0
      %p122 = por %p120, %p121
      %p123 = scmp.ne.s32.totalorder %s115, %s117
      %p124 = scmp.eq.s32.totalorder %s23, 1
      %p125 = por %p123, %p124
      %p126 = scmp.ne.s32.totalorder %s117, %s118
      %p127 = scmp.eq.s32.totalorder %s23, 0
      %p128 = por %p126, %p127
      %p129 = scmp.ne.s32.totalorder %s117, %s118
      %p130 = scmp.eq.s32.totalorder %s24, 1
      %p131 = por %p129, %p130
      %p133 = scmp.ne.s32.totalorder %s118, %s132
      %p134 = scmp.eq.s32.totalorder %s24, 0
      %p135 = por %p133, %p134
      %s136 = ssub.s32 %s18, %s25
      %p137 = scmp.eq.s32.totalorder %s136, 0
      %s139 = sadd.s32 %s138, 1
      %s140 = scalar_select %p137, %s138, %s139
      %p143 = pneg %p137
      %p144 = scmp.eq.s32.totalorder %s18, 1
      %p145 = por %p143, %p144
      %p146 = scmp.ne.s32.totalorder %s138, %s141
      %p147 = scmp.eq.s32.totalorder %s18, 0
      %p148 = por %p146, %p147
      %p149 = scmp.ne.s32.totalorder %s138, %s141
      %p150 = scmp.eq.s32.totalorder %s23, 1
      %p151 = por %p149, %p150
      %p152 = scmp.ne.s32.totalorder %s141, %s142
      %p153 = scmp.eq.s32.totalorder %s23, 0
      %p154 = por %p152, %p153
      %p155 = scmp.ne.s32.totalorder %s141, %s142
      %p156 = scmp.eq.s32.totalorder %s24, 1
      %p157 = por %p155, %p156
      %p159 = scmp.ne.s32.totalorder %s142, %s158
      %p160 = scmp.eq.s32.totalorder %s24, 0
      %p161 = por %p159, %p160
      %p162 = scmp.le.s32.totalorder 1, %s18
      %p163 = scmp.lt.s32.totalorder %s18, 3
      %p164 = pnand %p162, %p163
      %p165 = pneg %p164
      // Predicated region
      $region9: #{tpu_custom_call.1} parent=5 // pred_check
        _
      $region10: #{tpu_custom_call.1} parent=5 // pred_check_branch
        %167 = sbr.rel (%p164) target = $region12
      $region11: #{tpu_custom_call.1} parent=5 // pred_region
        %s168 = ssub.s32 %s18, 1
        // Predicated region
        $region13: #{tpu_custom_call.1} parent=11 // pred_check
          %p169 = pneg %p65
        $region14: #{tpu_custom_call.1} parent=11 // pred_check_branch
          %171 = sbr.rel (%p169) target = $region16
        $region15: #{tpu_custom_call.1} parent=11 // pred_region
          %s173 = ssub.s32 5120, 5120
          %174 = vsyncadd [#allocation6], %s173
          %s175 = sshll.u32 [#allocation5], 4
          %s176 = int_to_ptr.vmem [resolvable:$true] %s175
          %181 = dma.hbm_to_vmem [thread:$0]  %s1, 5120, %s176, [#allocation6], 64, 64, 4
        $region16: #{tpu_custom_call.1} parent=11 // pred_fallthru
          _
        // Predicated region
        $region17: #{tpu_custom_call.1} parent=11 // pred_check
          %p182 = pneg %p86
        $region18: #{tpu_custom_call.1} parent=11 // pred_check_branch
          %184 = sbr.rel (%p182) target = $region20
        $region19: #{tpu_custom_call.1} parent=11 // pred_region
          _
        $region20: #{tpu_custom_call.1} parent=11 // pred_fallthru
          _
        // Predicated region
        $region21: #{tpu_custom_call.1} parent=11 // pred_check
          %p185 = pneg %p107
        $region22: #{tpu_custom_call.1} parent=11 // pred_check_branch
          %187 = sbr.rel (%p185) target = $region24
        $region23: #{tpu_custom_call.1} parent=11 // pred_region
          %s189 = ssub.s32 1024, 1024
          %190 = vsyncadd [#allocation6], %s189
          %s191 = sshll.u32 [#allocation7], 4
          %s192 = int_to_ptr.vmem [resolvable:$true] %s191
          %197 = dma.hbm_to_vmem [thread:$0]  %s3, 1024, %s192, [#allocation6], 64, 64, 4
        $region24: #{tpu_custom_call.1} parent=11 // pred_fallthru
          _
        // Predicated region
        $region25: #{tpu_custom_call.1} parent=11 // pred_check
          %p198 = pneg %p128
        $region26: #{tpu_custom_call.1} parent=11 // pred_check_branch
          %200 = sbr.rel (%p198) target = $region28
        $region27: #{tpu_custom_call.1} parent=11 // pred_region
          _
        $region28: #{tpu_custom_call.1} parent=11 // pred_fallthru
          _
      $region12: #{tpu_custom_call.1} parent=5 // pred_fallthru
        _
      %p201 = scmp.lt.s32.totalorder %s18, 2
      // Predicated region
      $region29: #{tpu_custom_call.1} parent=5 // pred_check
        %p202 = pneg %p201
      $region30: #{tpu_custom_call.1} parent=5 // pred_check_branch
        %204 = sbr.rel (%p202) target = $region32
      $region31: #{tpu_custom_call.1} parent=5 // pred_region
        // Predicated region
        $region33: #{tpu_custom_call.1} parent=31 // pred_check
          %p205 = pneg %p38
        $region34: #{tpu_custom_call.1} parent=31 // pred_check_branch
          %207 = sbr.rel (%p205) target = $region36
        $region35: #{tpu_custom_call.1} parent=31 // pred_region
          %s208 = sand.u32 %s28, 1
          %s209 = scalar_lea.sflag [#allocation3], %s208
          %s210 = sand.u32 %s28, 1
          %s211 = smul.addr %s210, 20
          %s212 = scalar_lea.vmem [#allocation2], %s211
          %s214 = ssub.s32 320, 320
          %215 = vsyncadd %s209, %s214
          %s216 = smul.addr %s18, 5
          %s217 = smul.addr %s216, 64
          %s218 = scalar_lea.hbm %s0, %s217
          %s220 = sshll.u32 %s212, 4
          %s221 = int_to_ptr.vmem [resolvable:$true] %s220
          %223 = dma.hbm_to_vmem [thread:$0]  %s218, 320, %s221, %s209
        $region36: #{tpu_custom_call.1} parent=31 // pred_fallthru
          _
      $region32: #{tpu_custom_call.1} parent=5 // pred_fallthru
        _
      %p224 = scmp.le.s32.totalorder 1, %s18
      %p225 = scmp.lt.s32.totalorder %s18, 3
      %p226 = pnand %p224, %p225
      %p227 = pneg %p226
      // Predicated region
      $region37: #{tpu_custom_call.1} parent=5 // pred_check
        _
      $region38: #{tpu_custom_call.1} parent=5 // pred_check_branch
        %229 = sbr.rel (%p226) target = $region40
      $region39: #{tpu_custom_call.1} parent=5 // pred_region
        %s230 = ssub.s32 %s18, 1
        %s231 = sand.u32 %s31, 1
        %s232 = scalar_lea.sflag [#allocation3], %s231
        %s233 = sand.u32 %s31, 1
        %s234 = smul.addr %s233, 20
        %s235 = scalar_lea.vmem [#allocation2], %s234
        // Predicated region
        $region41: #{tpu_custom_call.1} parent=39 // pred_check
          %p236 = pneg %p44
        $region42: #{tpu_custom_call.1} parent=39 // pred_check_branch
          %238 = sbr.rel (%p236) target = $region44
        $region43: #{tpu_custom_call.1} parent=39 // pred_region
          %239 = dma.done %s232, 320
        $region44: #{tpu_custom_call.1} parent=39 // pred_fallthru
          _
        // Predicated region
        $region45: #{tpu_custom_call.1} parent=39 // pred_check
          %p240 = pneg %p65
        $region46: #{tpu_custom_call.1} parent=39 // pred_check_branch
          %242 = sbr.rel (%p240) target = $region48
        $region47: #{tpu_custom_call.1} parent=39 // pred_region
          %243 = dma.done [#allocation6], 5120
        $region48: #{tpu_custom_call.1} parent=39 // pred_fallthru
          _
        // Predicated region
        $region49: #{tpu_custom_call.1} parent=39 // pred_check
          %p244 = pneg %p107
        $region50: #{tpu_custom_call.1} parent=39 // pred_check_branch
          %246 = sbr.rel (%p244) target = $region52
        $region51: #{tpu_custom_call.1} parent=39 // pred_region
          %247 = dma.done [#allocation6], 1024
        $region52: #{tpu_custom_call.1} parent=39 // pred_fallthru
          _
        %s248 = sand.u32 %s31, 1
        %s249 = scalar_lea.sflag [#allocation3], %s248
        %s250 = sand.u32 %s31, 1
        %s251 = smul.addr %s250, 20
        %s252 = scalar_lea.vmem [#allocation2], %s251
        %p253 = pneg %p44
        %p254 = pneg %p41
        %p255 = pneg %p65
        %p256 = pneg %p62
        %p257 = pneg %p86
        %p258 = pneg %p83
        %p259 = pneg %p107
        %p260 = pneg %p104
        %p261 = pneg %p128
        %p262 = pneg %p125
        %p263 = pneg %p154
        %p264 = pneg %p151
        %s265 = sand.u32 %s141, 1
        %s266 = scalar_lea.sflag [#allocation4], %s265
        %s267 = sand.u32 %s141, 1
        %s268 = smul.addr %s267, 8
        %s269 = scalar_lea.vmem [#allocation8], %s268
        %v271 = vld [vmem:[%s235] sm:$0xff]
        %v272 = vld [vmem:[%s235 + $0x8] sm:$0xff]
        %v273 = vld [vmem:[%s235 + $0x10] sm:$0xf]
        %v274 = vld [vmem:[#allocation5] sm:$0xf]
        %v275 = vld [vmem:[#allocation5 + $0x4] sm:$0xf]
        %v276 = vld [vmem:[#allocation5 + $0x8] sm:$0xf]
        %v277 = vld [vmem:[#allocation5 + $0xc] sm:$0xf]
        %v278 = vld [vmem:[#allocation5 + $0x10] sm:$0xf]
        %v279 = vld [vmem:[#allocation5 + $0x14] sm:$0xf]
        %v280 = vld [vmem:[#allocation5 + $0x18] sm:$0xf]
        %v281 = vld [vmem:[#allocation5 + $0x1c] sm:$0xf]
        %v282 = vld [vmem:[#allocation5 + $0x20] sm:$0xf]
        %v283 = vld [vmem:[#allocation5 + $0x24] sm:$0xf]
        %v284 = vld [vmem:[#allocation5 + $0x28] sm:$0xf]
        %v285 = vld [vmem:[#allocation5 + $0x2c] sm:$0xf]
        %v286 = vld [vmem:[#allocation5 + $0x30] sm:$0xf]
        %v287 = vld [vmem:[#allocation5 + $0x34] sm:$0xf]
        %v288 = vld [vmem:[#allocation5 + $0x38] sm:$0xf]
        %v289 = vld [vmem:[#allocation5 + $0x3c] sm:$0xf]
        %v290 = vld [vmem:[#allocation5 + $0x40] sm:$0xf]
        %v291 = vld [vmem:[#allocation5 + $0x44] sm:$0xf]
        %v292 = vld [vmem:[#allocation5 + $0x48] sm:$0xf]
        %v293 = vld [vmem:[#allocation5 + $0x4c] sm:$0xf]
        %v294 = vld [vmem:[#allocation5 + $0x50] sm:$0xf]
        %v295 = vld [vmem:[#allocation5 + $0x54] sm:$0xf]
        %v296 = vld [vmem:[#allocation5 + $0x58] sm:$0xf]
        %v297 = vld [vmem:[#allocation5 + $0x5c] sm:$0xf]
        %v298 = vld [vmem:[#allocation5 + $0x60] sm:$0xf]
        %v299 = vld [vmem:[#allocation5 + $0x64] sm:$0xf]
        %v300 = vld [vmem:[#allocation5 + $0x68] sm:$0xf]
        %v301 = vld [vmem:[#allocation5 + $0x6c] sm:$0xf]
        %v302 = vld [vmem:[#allocation5 + $0x70] sm:$0xf]
        %v303 = vld [vmem:[#allocation5 + $0x74] sm:$0xf]
        %v304 = vld [vmem:[#allocation5 + $0x78] sm:$0xf]
        %v305 = vld [vmem:[#allocation5 + $0x7c] sm:$0xf]
        %v306 = vld [vmem:[#allocation5 + $0x80] sm:$0xf]
        %v307 = vld [vmem:[#allocation5 + $0x84] sm:$0xf]
        %v308 = vld [vmem:[#allocation5 + $0x88] sm:$0xf]
        %v309 = vld [vmem:[#allocation5 + $0x8c] sm:$0xf]
        %v310 = vld [vmem:[#allocation5 + $0x90] sm:$0xf]
        %v311 = vld [vmem:[#allocation5 + $0x94] sm:$0xf]
        %v312 = vld [vmem:[#allocation5 + $0x98] sm:$0xf]
        %v313 = vld [vmem:[#allocation5 + $0x9c] sm:$0xf]
        %v314 = vld [vmem:[#allocation5 + $0xa0] sm:$0xf]
        %v315 = vld [vmem:[#allocation5 + $0xa4] sm:$0xf]
        %v316 = vld [vmem:[#allocation5 + $0xa8] sm:$0xf]
        %v317 = vld [vmem:[#allocation5 + $0xac] sm:$0xf]
        %v318 = vld [vmem:[#allocation5 + $0xb0] sm:$0xf]
        %v319 = vld [vmem:[#allocation5 + $0xb4] sm:$0xf]
        %v320 = vld [vmem:[#allocation5 + $0xb8] sm:$0xf]
        %v321 = vld [vmem:[#allocation5 + $0xbc] sm:$0xf]
        %v322 = vld [vmem:[#allocation5 + $0xc0] sm:$0xf]
        %v323 = vld [vmem:[#allocation5 + $0xc4] sm:$0xf]
        %v324 = vld [vmem:[#allocation5 + $0xc8] sm:$0xf]
        %v325 = vld [vmem:[#allocation5 + $0xcc] sm:$0xf]
        %v326 = vld [vmem:[#allocation5 + $0xd0] sm:$0xf]
        %v327 = vld [vmem:[#allocation5 + $0xd4] sm:$0xf]
        %v328 = vld [vmem:[#allocation5 + $0xd8] sm:$0xf]
        %v329 = vld [vmem:[#allocation5 + $0xdc] sm:$0xf]
        %v330 = vld [vmem:[#allocation5 + $0xe0] sm:$0xf]
        %v331 = vld [vmem:[#allocation5 + $0xe4] sm:$0xf]
        %v332 = vld [vmem:[#allocation5 + $0xe8] sm:$0xf]
        %v333 = vld [vmem:[#allocation5 + $0xec] sm:$0xf]
        %v334 = vld [vmem:[#allocation5 + $0xf0] sm:$0xf]
        %v335 = vld [vmem:[#allocation5 + $0xf4] sm:$0xf]
        %v336 = vld [vmem:[#allocation5 + $0xf8] sm:$0xf]
        %v337 = vld [vmem:[#allocation5 + $0xfc] sm:$0xf]
        %v338 = vld [vmem:[#allocation5 + $0x100] sm:$0xf]
        %v339 = vld [vmem:[#allocation5 + $0x104] sm:$0xf]
        %v340 = vld [vmem:[#allocation5 + $0x108] sm:$0xf]
        %v341 = vld [vmem:[#allocation5 + $0x10c] sm:$0xf]
        %v342 = vld [vmem:[#allocation5 + $0x110] sm:$0xf]
        %v343 = vld [vmem:[#allocation5 + $0x114] sm:$0xf]
        %v344 = vld [vmem:[#allocation5 + $0x118] sm:$0xf]
        %v345 = vld [vmem:[#allocation5 + $0x11c] sm:$0xf]
        %v346 = vld [vmem:[#allocation5 + $0x120] sm:$0xf]
        %v347 = vld [vmem:[#allocation5 + $0x124] sm:$0xf]
        %v348 = vld [vmem:[#allocation5 + $0x128] sm:$0xf]
        %v349 = vld [vmem:[#allocation5 + $0x12c] sm:$0xf]
        %v350 = vld [vmem:[#allocation5 + $0x130] sm:$0xf]
        %v351 = vld [vmem:[#allocation5 + $0x134] sm:$0xf]
        %v352 = vld [vmem:[#allocation5 + $0x138] sm:$0xf]
        %v353 = vld [vmem:[#allocation5 + $0x13c] sm:$0xf]
        %v354 = vld [vmem:[%s2] sm:$0x1]
        %v356 = vlaneseq
        %v357 = vshrl.u32 %v356, 7
        %v358 = vsub.s32 0, %v357
        %v359 = vrot.slane %v354, %v358
        %v364 = vunpack.c.l.b16 %v271
        %v365 = vunpack.c.h.b16 %v271
        %v366 = vunpack.c.l.b16 %v272
        %v367 = vunpack.c.h.b16 %v272
        %v368 = vunpack.c.l.b16 %v273
        %v369 = vpack.c.b16 %v364, %v364
        %v370 = vpack.c.b16 %v365, %v365
        %v371 = vpack.c.b16 %v366, %v366
        %v372 = vpack.c.b16 %v367, %v367
        %v373 = vpack.c.b16 %v368, %v368
        %v459 = vunpack.c.l.b16 %v274
        %v460 = vunpack.c.l.b16 %v275
        %v461 = vunpack.c.l.b16 %v276
        %v462 = vunpack.c.l.b16 %v277
        %v463 = vunpack.c.l.b16 %v278
        %v464 = vunpack.c.l.b16 %v279
        %v465 = vunpack.c.l.b16 %v280
        %v466 = vunpack.c.l.b16 %v281
        %v467 = vunpack.c.l.b16 %v282
        %v468 = vunpack.c.l.b16 %v283
        %v469 = vunpack.c.l.b16 %v284
        %v470 = vunpack.c.l.b16 %v285
        %v471 = vunpack.c.l.b16 %v286
        %v472 = vunpack.c.l.b16 %v287
        %v473 = vunpack.c.l.b16 %v288
        %v474 = vunpack.c.l.b16 %v289
        %v475 = vunpack.c.l.b16 %v290
        %v476 = vunpack.c.l.b16 %v291
        %v477 = vunpack.c.l.b16 %v292
        %v478 = vunpack.c.l.b16 %v293
        %v479 = vunpack.c.l.b16 %v294
        %v480 = vunpack.c.l.b16 %v295
        %v481 = vunpack.c.l.b16 %v296
        %v482 = vunpack.c.l.b16 %v297
        %v483 = vunpack.c.l.b16 %v298
        %v484 = vunpack.c.l.b16 %v299
        %v485 = vunpack.c.l.b16 %v300
        %v486 = vunpack.c.l.b16 %v301
        %v487 = vunpack.c.l.b16 %v302
        %v488 = vunpack.c.l.b16 %v303
        %v489 = vunpack.c.l.b16 %v304
        %v490 = vunpack.c.l.b16 %v305
        %v491 = vunpack.c.l.b16 %v306
        %v492 = vunpack.c.l.b16 %v307
        %v493 = vunpack.c.l.b16 %v308
        %v494 = vunpack.c.l.b16 %v309
        %v495 = vunpack.c.l.b16 %v310
        %v496 = vunpack.c.l.b16 %v311
        %v497 = vunpack.c.l.b16 %v312
        %v498 = vunpack.c.l.b16 %v313
        %v499 = vunpack.c.l.b16 %v314
        %v500 = vunpack.c.l.b16 %v315
        %v501 = vunpack.c.l.b16 %v316
        %v502 = vunpack.c.l.b16 %v317
        %v503 = vunpack.c.l.b16 %v318
        %v504 = vunpack.c.l.b16 %v319
        %v505 = vunpack.c.l.b16 %v320
        %v506 = vunpack.c.l.b16 %v321
        %v507 = vunpack.c.l.b16 %v322
        %v508 = vunpack.c.l.b16 %v323
        %v509 = vunpack.c.l.b16 %v324
        %v510 = vunpack.c.l.b16 %v325
        %v511 = vunpack.c.l.b16 %v326
        %v512 = vunpack.c.l.b16 %v327
        %v513 = vunpack.c.l.b16 %v328
        %v514 = vunpack.c.l.b16 %v329
        %v515 = vunpack.c.l.b16 %v330
        %v516 = vunpack.c.l.b16 %v331
        %v517 = vunpack.c.l.b16 %v332
        %v518 = vunpack.c.l.b16 %v333
        %v519 = vunpack.c.l.b16 %v334
        %v520 = vunpack.c.l.b16 %v335
        %v521 = vunpack.c.l.b16 %v336
        %v522 = vunpack.c.l.b16 %v337
        %v523 = vunpack.c.l.b16 %v338
        %v524 = vunpack.c.l.b16 %v339
        %v525 = vunpack.c.l.b16 %v340
        %v526 = vunpack.c.l.b16 %v341
        %v527 = vunpack.c.l.b16 %v342
        %v528 = vunpack.c.l.b16 %v343
        %v529 = vunpack.c.l.b16 %v344
        %v530 = vunpack.c.l.b16 %v345
        %v531 = vunpack.c.l.b16 %v346
        %v532 = vunpack.c.l.b16 %v347
        %v533 = vunpack.c.l.b16 %v348
        %v534 = vunpack.c.l.b16 %v349
        %v535 = vunpack.c.l.b16 %v350
        %v536 = vunpack.c.l.b16 %v351
        %v537 = vunpack.c.l.b16 %v352
        %v538 = vunpack.c.l.b16 %v353
        %v539 = vpack.c.b16 %v460, %v459
        %v540 = vpack.c.b16 %v462, %v461
        %v541 = vpack.c.b16 %v464, %v463
        %v542 = vpack.c.b16 %v466, %v465
        %v543 = vpack.c.b16 %v468, %v467
        %v544 = vpack.c.b16 %v470, %v469
        %v545 = vpack.c.b16 %v472, %v471
        %v546 = vpack.c.b16 %v474, %v473
        %v547 = vpack.c.b16 %v476, %v475
        %v548 = vpack.c.b16 %v478, %v477
        %v549 = vpack.c.b16 %v480, %v479
        %v550 = vpack.c.b16 %v482, %v481
        %v551 = vpack.c.b16 %v484, %v483
        %v552 = vpack.c.b16 %v486, %v485
        %v553 = vpack.c.b16 %v488, %v487
        %v554 = vpack.c.b16 %v490, %v489
        %v555 = vpack.c.b16 %v492, %v491
        %v556 = vpack.c.b16 %v494, %v493
        %v557 = vpack.c.b16 %v496, %v495
        %v558 = vpack.c.b16 %v498, %v497
        %v559 = vpack.c.b16 %v500, %v499
        %v560 = vpack.c.b16 %v502, %v501
        %v561 = vpack.c.b16 %v504, %v503
        %v562 = vpack.c.b16 %v506, %v505
        %v563 = vpack.c.b16 %v508, %v507
        %v564 = vpack.c.b16 %v510, %v509
        %v565 = vpack.c.b16 %v512, %v511
        %v566 = vpack.c.b16 %v514, %v513
        %v567 = vpack.c.b16 %v516, %v515
        %v568 = vpack.c.b16 %v518, %v517
        %v569 = vpack.c.b16 %v520, %v519
        %v570 = vpack.c.b16 %v522, %v521
        %v571 = vpack.c.b16 %v524, %v523
        %v572 = vpack.c.b16 %v526, %v525
        %v573 = vpack.c.b16 %v528, %v527
        %v574 = vpack.c.b16 %v530, %v529
        %v575 = vpack.c.b16 %v532, %v531
        %v576 = vpack.c.b16 %v534, %v533
        %v577 = vpack.c.b16 %v536, %v535
        %v578 = vpack.c.b16 %v538, %v537
        %619 = vmatprep.subr.bf16.mxu0 0
        %620 = vmatpush1.bf16.msra.mxu0 %v539
        %621 = vmatprep.subr.bf16.mxu0 0
        %622 = vmatpush1.bf16.msra.mxu0 %v540
        %623 = vmatprep.subr.bf16.mxu0 0
        %624 = vmatpush1.bf16.msra.mxu0 %v541
        %625 = vmatprep.subr.bf16.mxu0 0
        %626 = vmatpush1.bf16.msra.mxu0 %v542
        %627 = vmatprep.subr.bf16.mxu0 0
        %628 = vmatpush1.bf16.msra.mxu0 %v543
        %629 = vmatprep.subr.bf16.mxu0 0
        %630 = vmatpush1.bf16.msra.mxu0 %v544
        %631 = vmatprep.subr.bf16.mxu0 0
        %632 = vmatpush1.bf16.msra.mxu0 %v545
        %633 = vmatprep.subr.bf16.mxu0 0
        %634 = vmatpush1.bf16.msra.mxu0 %v546
        %635 = vmatprep.subr.bf16.mxu0 0
        %636 = vmatpush1.bf16.msra.mxu0 %v547
        %637 = vmatprep.subr.bf16.mxu0 0
        %638 = vmatpush1.bf16.msra.mxu0 %v548
        %639 = vmatprep.subr.bf16.mxu0 0
        %640 = vmatpush1.bf16.msra.mxu0 %v549
        %641 = vmatprep.subr.bf16.mxu0 0
        %642 = vmatpush1.bf16.msra.mxu0 %v550
        %643 = vmatprep.subr.bf16.mxu0 0
        %644 = vmatpush1.bf16.msra.mxu0 %v551
        %645 = vmatprep.subr.bf16.mxu0 0
        %646 = vmatpush1.bf16.msra.mxu0 %v552
        %647 = vmatprep.subr.bf16.mxu0 0
        %648 = vmatpush1.bf16.msra.mxu0 %v553
        %649 = vmatprep.subr.bf16.mxu0 0
        %650 = vmatpush1.bf16.msra.mxu0 %v554
        %651 = vmatprep.mubr.bf16.mxu0 %v370
        %652 = vmatmul.mubr.bf16.gmra.mrb[0].mxu0 %v369
        %v653 = vpop.f32.mrb[0].mxu0
        %v654 = vadd.f32 %v359, %v653
        %v655 = vpop.f32.mrb[0].mxu0
        %v656 = vpop.f32.mrb[0].mxu0
        %v657 = vpop.f32.mrb[0].mxu0
        %658 = vdwg.mxu0
        %659 = vmatprep.subr.bf16.mxu0 0
        %660 = vmatpush1.bf16.msra.mxu0 %v555
        %661 = vmatprep.subr.bf16.mxu0 0
        %662 = vmatpush1.bf16.msra.mxu0 %v556
        %663 = vmatprep.subr.bf16.mxu0 0
        %664 = vmatpush1.bf16.msra.mxu0 %v557
        %665 = vmatprep.subr.bf16.mxu0 0
        %666 = vmatpush1.bf16.msra.mxu0 %v558
        %667 = vmatprep.subr.bf16.mxu0 0
        %668 = vmatpush1.bf16.msra.mxu0 %v559
        %669 = vmatprep.subr.bf16.mxu0 0
        %670 = vmatpush1.bf16.msra.mxu0 %v560
        %671 = vmatprep.subr.bf16.mxu0 0
        %672 = vmatpush1.bf16.msra.mxu0 %v561
        %673 = vmatprep.subr.bf16.mxu0 0
        %674 = vmatpush1.bf16.msra.mxu0 %v562
        %675 = vmatprep.subr.bf16.mxu0 0
        %676 = vmatpush1.bf16.msra.mxu0 %v563
        %677 = vmatprep.subr.bf16.mxu0 0
        %678 = vmatpush1.bf16.msra.mxu0 %v564
        %679 = vmatprep.subr.bf16.mxu0 0
        %680 = vmatpush1.bf16.msra.mxu0 %v565
        %681 = vmatprep.subr.bf16.mxu0 0
        %682 = vmatpush1.bf16.msra.mxu0 %v566
        %683 = vmatprep.subr.bf16.mxu0 0
        %684 = vmatpush1.bf16.msra.mxu0 %v567
        %685 = vmatprep.subr.bf16.mxu0 0
        %686 = vmatpush1.bf16.msra.mxu0 %v568
        %687 = vmatprep.subr.bf16.mxu0 0
        %688 = vmatpush1.bf16.msra.mxu0 %v569
        %689 = vmatprep.subr.bf16.mxu0 0
        %690 = vmatpush1.bf16.msra.mxu0 %v570
        %691 = vmatprep.mubr.bf16.mxu0 %v372
        %692 = vmatmul.mubr.bf16.gmra.mrb[0].mxu0 %v371
        %v693 = vpop.f32.mrb[0].mxu0
        %v694 = vadd.f32 %v654, %v693
        %v695 = vpop.f32.mrb[0].mxu0
        %v696 = vpop.f32.mrb[0].mxu0
        %v697 = vpop.f32.mrb[0].mxu0
        %698 = vdwg.mxu0
        %699 = vmatprep.subr.bf16.mxu0 0
        %700 = vmatpush1.bf16.msra.mxu0 %v571
        %701 = vmatprep.subr.bf16.mxu0 0
        %702 = vmatpush1.bf16.msra.mxu0 %v572
        %703 = vmatprep.subr.bf16.mxu0 0
        %704 = vmatpush1.bf16.msra.mxu0 %v573
        %705 = vmatprep.subr.bf16.mxu0 0
        %706 = vmatpush1.bf16.msra.mxu0 %v574
        %707 = vmatprep.subr.bf16.mxu0 0
        %708 = vmatpush1.bf16.msra.mxu0 %v575
        %709 = vmatprep.subr.bf16.mxu0 0
        %710 = vmatpush1.bf16.msra.mxu0 %v576
        %711 = vmatprep.subr.bf16.mxu0 0
        %712 = vmatpush1.bf16.msra.mxu0 %v577
        %713 = vmatprep.subr.bf16.mxu0 0
        %714 = vmatpush1.bf16.msra.mxu0 %v578
        %715 = vmatprep.subr.bf16.mxu0 0
        %716 = vmatpush1.bf16.msra.mxu0 0
        %717 = vmatprep.subr.bf16.mxu0 0
        %718 = vmatpush1.bf16.msra.mxu0 0
        %719 = vmatprep.subr.bf16.mxu0 0
        %720 = vmatpush1.bf16.msra.mxu0 0
        %721 = vmatprep.subr.bf16.mxu0 0
        %722 = vmatpush1.bf16.msra.mxu0 0
        %723 = vmatprep.subr.bf16.mxu0 0
        %724 = vmatpush1.bf16.msra.mxu0 0
        %725 = vmatprep.subr.bf16.mxu0 0
        %726 = vmatpush1.bf16.msra.mxu0 0
        %727 = vmatprep.subr.bf16.mxu0 0
        %728 = vmatpush1.bf16.msra.mxu0 0
        %729 = vmatprep.subr.bf16.mxu0 0
        %730 = vmatpush1.bf16.msra.mxu0 0
        %731 = vmatprep.mubr.bf16.mxu0 0
        %732 = vmatmul.mubr.bf16.gmra.mrb[0].mxu0 %v373
        %v733 = vpop.f32.mrb[0].mxu0
        %v734 = vadd.f32 %v694, %v733
        %v735 = vpop.f32.mrb[0].mxu0
        %v736 = vpop.f32.mrb[0].mxu0
        %v737 = vpop.f32.mrb[0].mxu0
        %738 = vdwg.mxu0
        %v739 = vmax.f32 %v734, 0.0
        %v740 = vpack.c.bf16 %v739, %v739
        %v741 = vld [vmem:[#allocation7] sm:$0xf]
        %v742 = vld [vmem:[#allocation7 + $0x4] sm:$0xf]
        %v743 = vld [vmem:[#allocation7 + $0x8] sm:$0xf]
        %v744 = vld [vmem:[#allocation7 + $0xc] sm:$0xf]
        %v745 = vld [vmem:[#allocation7 + $0x10] sm:$0xf]
        %v746 = vld [vmem:[#allocation7 + $0x14] sm:$0xf]
        %v747 = vld [vmem:[#allocation7 + $0x18] sm:$0xf]
        %v748 = vld [vmem:[#allocation7 + $0x1c] sm:$0xf]
        %v749 = vld [vmem:[#allocation7 + $0x20] sm:$0xf]
        %v750 = vld [vmem:[#allocation7 + $0x24] sm:$0xf]
        %v751 = vld [vmem:[#allocation7 + $0x28] sm:$0xf]
        %v752 = vld [vmem:[#allocation7 + $0x2c] sm:$0xf]
        %v753 = vld [vmem:[#allocation7 + $0x30] sm:$0xf]
        %v754 = vld [vmem:[#allocation7 + $0x34] sm:$0xf]
        %v755 = vld [vmem:[#allocation7 + $0x38] sm:$0xf]
        %v756 = vld [vmem:[#allocation7 + $0x3c] sm:$0xf]
        %v757 = vld [vmem:[%s4] sm:$0x1]
        %v759 = vlaneseq
        %v760 = vshrl.u32 %v759, 7
        %v761 = vsub.s32 0, %v760
        %v762 = vrot.slane %v757, %v761
        %v780 = vunpack.c.l.b16 %v741
        %v781 = vunpack.c.l.b16 %v742
        %v782 = vunpack.c.l.b16 %v743
        %v783 = vunpack.c.l.b16 %v744
        %v784 = vunpack.c.l.b16 %v745
        %v785 = vunpack.c.l.b16 %v746
        %v786 = vunpack.c.l.b16 %v747
        %v787 = vunpack.c.l.b16 %v748
        %v788 = vunpack.c.l.b16 %v749
        %v789 = vunpack.c.l.b16 %v750
        %v790 = vunpack.c.l.b16 %v751
        %v791 = vunpack.c.l.b16 %v752
        %v792 = vunpack.c.l.b16 %v753
        %v793 = vunpack.c.l.b16 %v754
        %v794 = vunpack.c.l.b16 %v755
        %v795 = vunpack.c.l.b16 %v756
        %v796 = vpack.c.b16 %v781, %v780
        %v797 = vpack.c.b16 %v783, %v782
        %v798 = vpack.c.b16 %v785, %v784
        %v799 = vpack.c.b16 %v787, %v786
        %v800 = vpack.c.b16 %v789, %v788
        %v801 = vpack.c.b16 %v791, %v790
        %v802 = vpack.c.b16 %v793, %v792
        %v803 = vpack.c.b16 %v795, %v794
        %812 = vmatprep.subr.bf16.mxu0 0
        %813 = vmatpush1.bf16.msra.mxu0 %v796
        %814 = vmatprep.subr.bf16.mxu0 0
        %815 = vmatpush1.bf16.msra.mxu0 %v797
        %816 = vmatprep.subr.bf16.mxu0 0
        %817 = vmatpush1.bf16.msra.mxu0 %v798
        %818 = vmatprep.subr.bf16.mxu0 0
        %819 = vmatpush1.bf16.msra.mxu0 %v799
        %820 = vmatprep.subr.bf16.mxu0 0
        %821 = vmatpush1.bf16.msra.mxu0 %v800
        %822 = vmatprep.subr.bf16.mxu0 0
        %823 = vmatpush1.bf16.msra.mxu0 %v801
        %824 = vmatprep.subr.bf16.mxu0 0
        %825 = vmatpush1.bf16.msra.mxu0 %v802
        %826 = vmatprep.subr.bf16.mxu0 0
        %827 = vmatpush1.bf16.msra.mxu0 %v803
        %828 = vmatprep.subr.bf16.mxu0 0
        %829 = vmatpush1.bf16.msra.mxu0 0
        %830 = vmatprep.subr.bf16.mxu0 0
        %831 = vmatpush1.bf16.msra.mxu0 0
        %832 = vmatprep.subr.bf16.mxu0 0
        %833 = vmatpush1.bf16.msra.mxu0 0
        %834 = vmatprep.subr.bf16.mxu0 0
        %835 = vmatpush1.bf16.msra.mxu0 0
        %836 = vmatprep.subr.bf16.mxu0 0
        %837 = vmatpush1.bf16.msra.mxu0 0
        %838 = vmatprep.subr.bf16.mxu0 0
        %839 = vmatpush1.bf16.msra.mxu0 0
        %840 = vmatprep.subr.bf16.mxu0 0
        %841 = vmatpush1.bf16.msra.mxu0 0
        %842 = vmatprep.subr.bf16.mxu0 0
        %843 = vmatpush1.bf16.msra.mxu0 0
        %844 = vmatprep.mubr.bf16.mxu0 0
        %845 = vmatmul.mubr.bf16.gmra.mrb[0].mxu0 %v740
        %v846 = vpop.f32.mrb[0].mxu0
        %v847 = vadd.f32 %v762, %v846
        %v848 = vpop.f32.mrb[0].mxu0
        %v849 = vpop.f32.mrb[0].mxu0
        %v850 = vpop.f32.mrb[0].mxu0
        %851 = vdwg.mxu0
        %v852 = vsub.f32 0.0, %v847
        %v853 = vmax.f32 %v852, 0.0
        %v854 = vand.u32 2147483647, %v847
        %v855 = vsub.f32 0.0, %v854
        %v856 = vmul.f32 %v855, 1.442695
        %v857 = vpow.pop %v856
        %v858 = vadd.f32 %v857, 1.0
        %v859 = vlog2.pop %v858
        %v860 = vmul.f32 %v859, 0.6931472
        %v861 = vadd.f32 %v853, %v860
        %v862 = vsub.f32 0.0, %v861
        %v863 = vmul.f32 %v862, 1.442695
        %v864 = vpow.pop %v863
        %v865 = vmul.f32 %v864, 2.5257287
        %v866 = vmul.f32 %v865, 1.442695
        %v867 = vpow.pop %v866
        %v868 = vmul.f32 %v867, 80.0
        %vm869 = vcmp.lt.f32.partialorder %v868, 80.0
        %v870 = vsel %vm869, 0.0, %v868
        %v871 = vmul.f32 %v861, -2.3025851
        %v872 = vmul.f32 %v871, 1.442695
        %v873 = vpow.pop %v872
        %v874 = vmul.f32 %v873, 2.0
        %v875 = vadd.f32 %v874, 1e-07
        %v876 = vlaneseq
        %v877 = vand.u32 %v876, 127
        %vm878 = vcmp.eq.s32.totalorder %v877, 0
        %vm879 = vcmp.lt.s32.totalorder %v877, 51
        %v880 = vsel %vm879, %v875, 0.0
        %v881 = vsel %vm878, %v870, %v880
        %882 = vst [vmem:[%s269] sm:$0xff] %v881
        %s883 = sand.u32 %s141, 1
        %s884 = scalar_lea.sflag [#allocation4], %s883
        %s885 = sand.u32 %s141, 1
        %s886 = smul.addr %s885, 8
        %s887 = scalar_lea.vmem [#allocation8], %s886
        // Predicated region
        $region53: #{tpu_custom_call.1} parent=39 // pred_check
          %p888 = pneg %p151
        $region54: #{tpu_custom_call.1} parent=39 // pred_check_branch
          %890 = sbr.rel (%p888) target = $region56
        $region55: #{tpu_custom_call.1} parent=39 // pred_region
          %s892 = ssub.s32 128, 128
          %893 = vsyncadd %s884, %s892
          %s894 = smul.addr %s23, 128
          %s895 = scalar_lea.hbm %s5, %s894
          %s897 = sshll.u32 %s887, 4
          %s898 = int_to_ptr.vmem [resolvable:$true] %s897
          %900 = dma.vmem_to_hbm [thread:$0]  %s898, 128, %s895, %s884
        $region56: #{tpu_custom_call.1} parent=39 // pred_fallthru
          _
      $region40: #{tpu_custom_call.1} parent=5 // pred_fallthru
        _
      %p901 = scmp.le.s32.totalorder 2, %s18
      // Predicated region
      $region57: #{tpu_custom_call.1} parent=5 // pred_check
        %p902 = pneg %p901
      $region58: #{tpu_custom_call.1} parent=5 // pred_check_branch
        %904 = sbr.rel (%p902) target = $region60
      $region59: #{tpu_custom_call.1} parent=5 // pred_region
        %s905 = ssub.s32 %s18, 2
        // Predicated region
        $region61: #{tpu_custom_call.1} parent=59 // pred_check
          %p906 = pneg %p157
        $region62: #{tpu_custom_call.1} parent=59 // pred_check_branch
          %908 = sbr.rel (%p906) target = $region64
        $region63: #{tpu_custom_call.1} parent=59 // pred_region
          %s909 = sand.u32 %s142, 1
          %s910 = scalar_lea.sflag [#allocation4], %s909
          %s911 = sand.u32 %s142, 1
          %s912 = smul.addr %s911, 8
          %s913 = scalar_lea.vmem [#allocation8], %s912
          %914 = dma.done %s910, 128
        $region64: #{tpu_custom_call.1} parent=59 // pred_fallthru
          _
      $region60: #{tpu_custom_call.1} parent=5 // pred_fallthru
        _
    $region6: #{tpu_custom_call.1} parent=1 // loop_footer
      %s22 = sadd.s32 1, %s18
    $region7: #{tpu_custom_call.1} parent=1 // loop_footer_branch
      %17 = sbr.rel target = $region3
    $region8: #{tpu_custom_call.1} parent=1 // loop_exit
      _
    %915 = vsyncpa [#allocation3], 1
    %s916 = scalar_lea.sflag [#allocation3], 1
    %917 = vsyncpa %s916, 1
    %918 = vsyncpa [#allocation6], 1
    %919 = vsyncpa [#allocation4], 1
    %s920 = scalar_lea.sflag [#allocation4], 1
    %921 = vsyncpa %s920, 1

</llo_original>
